<compile_context>
chip_gen: v5e
topology: v5e:2x2
jax: 0.10.0
libtpu: 0.0.40
codegen_flags: <defaults>
</compile_context>

<pallas_src>
import math

import jax
import jax.numpy as jnp
from jax import lax
from jax.experimental import pallas as pl
from jax.experimental.pallas import tpu as pltpu

_EPS = 1e-5


def _sublane(dtype):
    # Sublane packing multiple: 8 rows for 32-bit, 16 for 16-bit, 32 for 8-bit.
    return {4: 8, 2: 16, 1: 32}.get(jnp.dtype(dtype).itemsize, 8)


def _tpu_info():
    try:
        return pltpu.get_tpu_info()
    except Exception:
        return None


def _vmem_capacity_bytes():
    info = _tpu_info()
    if info is not None:
        for name in ("vmem_capacity_bytes", "vmem_size_bytes", "vmem_bytes"):
            v = getattr(info, name, None)
            if v is None:
                continue
            try:
                v = int(v)
            except Exception:
                continue
            if v > 0:
                return v
    return 64 * 1024 * 1024  # conservative default (v7x per-TC size)


def _vmem_budget_and_limit():
    """(double-buffered working-set budget, explicit scoped-VMEM limit)."""
    cap = _vmem_capacity_bytes()
    # Treat capacity as per-TensorCore: ~32 MiB budget on v7x (64 MiB/TC),
    # ~40 MiB on v5e/v6e (128 MiB physical).  The limit is raised above v5e's
    # 16 MiB scoped default but kept safely below v7x's 64 MiB/TC.
    budget = min(40 * 2**20, cap // 2)
    limit = max(32 * 2**20, min(cap - 8 * 2**20, 56 * 2**20))
    return budget, int(limit)


def _dimension_semantics():
    # On multi-TensorCore chips (v7x) explicitly shard the row grid across TCs;
    # single-TC chips (v5e/v6e) fall back to plain "parallel".
    info = _tpu_info()
    cores = None
    if info is not None:
        for name in ("num_tensorcores", "tensorcores_per_chip",
                     "num_cores_per_chip", "num_cores"):
            v = getattr(info, name, None)
            if v is None:
                continue
            try:
                v = int(v)
            except Exception:
                continue
            if v > 0:
                cores = v
                break
    if cores is not None and cores > 1 and hasattr(pltpu, "CORE_PARALLEL"):
        return (pltpu.CORE_PARALLEL,)
    return ("parallel",)


def _pick_row_tile(Rf, gc, dtype, budget):
    """Largest row tile whose double-buffered working set fits the budget."""
    itemsize = jnp.dtype(dtype).itemsize
    sub = _sublane(dtype)
    # Double-buffered input + output tiles plus ~6 full-tile f32 temporaries
    # (f32 cast, centered d, d*d, hi/lo splits, inv broadcast, cast-back
    # staging) -- deliberately generous so the compiler stays under the limit.
    bytes_per_row = gc * (4 * itemsize + 6 * 4)
    max_rows = max(sub, budget // max(bytes_per_row, 1))
    rt = max(sub, (max_rows // sub) * sub)
    if Rf <= rt:
        return Rf  # single full-extent block
    return rt


def _make_kernel(g, C):
    """Kernel for tiles of shape (row_tile, g*C); each row packs g segments."""
    gc = g * C

    def kernel(x_ref, w_ref, o_ref):
        f32 = jnp.float32
        x = x_ref[...].astype(f32)
        w = w_ref[...].astype(f32)            # (1, g*C), weight tiled g times
        inv_c = f32(1.0 / C)

        if g == 1:
            # Lane axis already >= 128 (or full-extent): plain two-pass stats.
            mean = jnp.sum(x, axis=-1, keepdims=True) * inv_c
            d = x - mean
            var = jnp.sum(d * d, axis=-1, keepdims=True) * inv_c
            inv_full = lax.rsqrt(var + _EPS)
        else:
            # Per-segment sums via tiny 0/1 segment matmuls on the idle MXU.
            bf16 = jnp.bfloat16
            j = lax.broadcasted_iota(jnp.int32, (gc, g), 0)
            s = lax.broadcasted_iota(jnp.int32, (gc, g), 1)
            dj = j - s * C
            S = ((dj >= 0) & (dj < C)).astype(bf16)          # (g*C, g)
            jt = lax.broadcasted_iota(jnp.int32, (g, gc), 1)
            st = lax.broadcasted_iota(jnp.int32, (g, gc), 0)
            djt = jt - st * C
            St = ((djt >= 0) & (djt < C)).astype(bf16)       # (g, g*C)

            def segsum(v):        # (rows, g*C) f32 -> (rows, g) f32, ~f32-exact
                hi = v.astype(bf16)
                lo = (v - hi.astype(f32)).astype(bf16)
                return (jnp.dot(hi, S, preferred_element_type=f32)
                        + jnp.dot(lo, S, preferred_element_type=f32))

            def segbcast(v):      # (rows, g) f32 -> (rows, g*C) f32, ~f32-exact
                hi = v.astype(bf16)
                lo = (v - hi.astype(f32)).astype(bf16)
                return (jnp.dot(hi, St, preferred_element_type=f32)
                        + jnp.dot(lo, St, preferred_element_type=f32))

            # Shifted two-pass variance: center on a cheap approximate
            # per-segment mean (single bf16 pass), then correct exactly.
            shift = (jnp.dot(x.astype(bf16), S, preferred_element_type=f32)
                     * inv_c).astype(bf16)
            shift_full = jnp.dot(shift, St, preferred_element_type=f32)  # exact
            d = x - shift_full
            mu_d = jnp.dot(d.astype(bf16), S, preferred_element_type=f32) * inv_c
            var = segsum(d * d) * inv_c - mu_d * mu_d
            var = jnp.maximum(var, 0.0)
            inv_full = segbcast(lax.rsqrt(var + _EPS))

        # Bias-free: the mean is deliberately NOT subtracted from x.
        o_ref[...] = (x * inv_full * w).astype(o_ref.dtype)

    return kernel


def biasfree_layernorm(x, weight, *, row_tile=None):
    """Bias-free LayerNorm over the last axis. x: (..., C); weight: (C,)."""
    C = x.shape[-1]
    assert weight.shape == (C,)
    lead_shape = x.shape[:-1]
    R = math.prod(lead_shape)

    # Lane-density fold: pack g rows into one kernel row so the last (lane)
    # axis is a multiple of 128 (unmasked stores, no vreg/VMEM padding).
    g = 128 // math.gcd(C, 128)
    if g > 1 and R % g != 0:
        # TODO(synk): pad R up to a multiple of g instead of falling back to
        # the lane-sparse path for ragged row counts.
        g = 1
    Rf = R // g
    gc = g * C

    x2 = x.reshape(Rf, gc)
    w2 = (jnp.tile(weight, (g,)) if g > 1 else weight).reshape(1, gc)

    budget, vmem_limit = _vmem_budget_and_limit()
    sub = _sublane(x.dtype)
    if row_tile is None:
        row_tile = _pick_row_tile(Rf, gc, x.dtype, budget)
    row_tile = int(row_tile)
    if row_tile >= Rf:
        row_tile = Rf
    else:
        row_tile = max(sub, (row_tile // sub) * sub)
        row_tile = min(row_tile, Rf)

    grid = (pl.cdiv(Rf, row_tile),)  # tail block clipped; overhang never stored

    itemsize = jnp.dtype(x.dtype).itemsize
    cost = pl.CostEstimate(
        flops=int(12 * R * C),                 # elementwise + segment matmuls
        transcendentals=int(R),                # one rsqrt per normalized row
        bytes_accessed=int(2 * R * C * itemsize + C * itemsize),
    )

    out2 = pl.pallas_call(
        _make_kernel(g, C),
        out_shape=jax.ShapeDtypeStruct((Rf, gc), x.dtype),
        grid_spec=pltpu.PrefetchScalarGridSpec(
            num_scalar_prefetch=0,
            grid=grid,
            in_specs=[
                pl.BlockSpec((row_tile, gc), lambda i: (i, 0)),
                pl.BlockSpec((1, gc), lambda i: (0, 0)),   # weight stays resident
            ],
            out_specs=pl.BlockSpec((row_tile, gc), lambda i: (i, 0)),
        ),
        compiler_params=pltpu.CompilerParams(
            dimension_semantics=_dimension_semantics(),
            vmem_limit_bytes=vmem_limit,
        ),
        cost_estimate=cost,
    )(x2, w2)

    return out2.reshape(*lead_shape, C)


def _reference(x, weight):
    xf = x.astype(jnp.float32)
    var = jnp.var(xf, axis=-1, keepdims=True)  # population variance
    return xf / jnp.sqrt(var + _EPS) * weight.astype(jnp.float32)


if __name__ == "__main__":
    key = jax.random.PRNGKey(0)
    k0, k1, k2, k3, k4 = jax.random.split(key, 5)

    def check(x, w, tol, **kw):
        out = jax.block_until_ready(biasfree_layernorm(x, w, **kw))
        assert out.shape == x.shape and out.dtype == x.dtype
        ref = _reference(x, w)
        err = float(jnp.max(jnp.abs(out.astype(jnp.float32) - ref)))
        ok = jnp.allclose(out.astype(jnp.float32), ref, atol=tol, rtol=tol)
        assert bool(ok), f"mismatch: shape={x.shape} dtype={x.dtype} max_err={err:.3e}"

    # Module-style shape: batch=2, seq=8, hidden=32 (normalized_shape = 32).
    # C=32 < 128 exercises the lane-density fold (g=4 -> folded lane width 128).
    B, S, C = 2, 8, 32
    x = jax.random.normal(k0, (B, S, C), dtype=jnp.float32)
    weight = jnp.ones((C,), dtype=jnp.float32)
    check(x, weight, 2e-5)

    # Folded path with an uneven grid (cdiv-padded tail block) and nonzero mean.
    x = jax.random.normal(k1, (160, C), dtype=jnp.float32) * 2.0 + 3.0
    check(x, weight, 2e-5, row_tile=16)

    # bf16 input, C=48 (Restormer width): fold g=8 -> folded lane width 384.
    w48 = 1.0 + 0.1 * jax.random.normal(k2, (48,), dtype=jnp.float32)
    xb = jax.random.normal(k3, (24, 48), dtype=jnp.bfloat16)
    check(xb, w48, 5e-2)

    # C already a multiple of 128 -> plain (g=1) lane-dense path.
    x = jax.random.normal(k4, (16, 256), dtype=jnp.float32)
    check(x, jnp.ones((256,), jnp.float32), 2e-5)

    # Ragged row count (R % g != 0) -> lane-sparse fallback path.
    x = jax.random.normal(k0, (10, 48), dtype=jnp.float32)
    check(x, w48, 2e-5)

    print("KERNEL_OK")
</pallas_src>

<mosaic_0001>
module attributes {stable_mosaic.version = 11 : i64} {
  func.func @kernel(%arg0: i32, %arg1: memref<4x128xf32, #tpu.memory_space<vmem>>, %arg2: memref<1x128xf32, #tpu.memory_space<vmem>>, %arg3: memref<4x128xf32, #tpu.memory_space<vmem>>) attributes {dimension_semantics = [#tpu.dimension_semantics<parallel>], iteration_bounds = array<i64: 1>, scalar_prefetch = 0 : i64, scratch_operands = 0 : i64, tpu.core_type = #tpu.core_type<tc>, window_params = [{transform_indices = @transform_0, window_bounds = array<i64: 4, 128>}, {pipeline_mode = #tpu.pipeline_mode<synchronous>, transform_indices = @transform_1, window_bounds = array<i64: 1, 128>}, {transform_indices = @transform_2, window_bounds = array<i64: 4, 128>}]} {
    %c0 = arith.constant 0 : index
    %c0_0 = arith.constant 0 : index
    %0 = vector.load %arg1[%c0, %c0_0] : memref<4x128xf32, #tpu.memory_space<vmem>>, vector<4x128xf32>
    %c0_1 = arith.constant 0 : index
    %c0_2 = arith.constant 0 : index
    %1 = vector.load %arg2[%c0_1, %c0_2] : memref<1x128xf32, #tpu.memory_space<vmem>>, vector<1x128xf32>
    %2 = tpu.iota {dimensions = array<i32: 0>} : vector<128x4xi32>
    %3 = tpu.iota {dimensions = array<i32: 1>} : vector<128x4xi32>
    %c32_i32 = arith.constant 32 : i32
    %4 = vector.broadcast %c32_i32 : i32 to vector<128x4xi32>
    %5 = arith.muli %3, %4 : vector<128x4xi32>
    %6 = arith.subi %2, %5 : vector<128x4xi32>
    %c0_i32 = arith.constant 0 : i32
    %7 = vector.broadcast %c0_i32 : i32 to vector<128x4xi32>
    %8 = arith.cmpi sge, %6, %7 : vector<128x4xi32>
    %c32_i32_3 = arith.constant 32 : i32
    %9 = vector.broadcast %c32_i32_3 : i32 to vector<128x4xi32>
    %10 = arith.cmpi slt, %6, %9 : vector<128x4xi32>
    %11 = arith.andi %8, %10 : vector<128x4xi1>
    %12 = arith.extui %11 : vector<128x4xi1> to vector<128x4xi32>
    %13 = arith.sitofp %12 : vector<128x4xi32> to vector<128x4xf32>
    %14 = arith.truncf %13 : vector<128x4xf32> to vector<128x4xbf16>
    %15 = tpu.iota {dimensions = array<i32: 1>} : vector<4x128xi32>
    %16 = tpu.iota {dimensions = array<i32: 0>} : vector<4x128xi32>
    %c32_i32_4 = arith.constant 32 : i32
    %17 = vector.broadcast %c32_i32_4 : i32 to vector<4x128xi32>
    %18 = arith.muli %16, %17 : vector<4x128xi32>
    %19 = arith.subi %15, %18 : vector<4x128xi32>
    %c0_i32_5 = arith.constant 0 : i32
    %20 = vector.broadcast %c0_i32_5 : i32 to vector<4x128xi32>
    %21 = arith.cmpi sge, %19, %20 : vector<4x128xi32>
    %c32_i32_6 = arith.constant 32 : i32
    %22 = vector.broadcast %c32_i32_6 : i32 to vector<4x128xi32>
    %23 = arith.cmpi slt, %19, %22 : vector<4x128xi32>
    %24 = arith.andi %21, %23 : vector<4x128xi1>
    %25 = arith.extui %24 : vector<4x128xi1> to vector<4x128xi32>
    %26 = arith.sitofp %25 : vector<4x128xi32> to vector<4x128xf32>
    %27 = arith.truncf %26 : vector<4x128xf32> to vector<4x128xbf16>
    %28 = arith.truncf %0 : vector<4x128xf32> to vector<4x128xbf16>
    %cst = arith.constant dense<0.000000e+00> : vector<4x4xf32>
    %29 = tpu.matmul %28, %14, %cst {dimension_numbers = #tpu.dot_dimension_numbers<[1], [0], [0], [1], [0, 0, 1, 1], [], []>} : vector<4x128xbf16>, vector<128x4xbf16>, vector<4x4xf32> -> vector<4x4xf32>
    %cst_7 = arith.constant 3.125000e-02 : f32
    %30 = vector.broadcast %cst_7 : f32 to vector<4x4xf32>
    %31 = arith.mulf %29, %30 : vector<4x4xf32>
    %32 = arith.truncf %31 : vector<4x4xf32> to vector<4x4xbf16>
    %cst_8 = arith.constant dense<0.000000e+00> : vector<4x128xf32>
    %33 = tpu.matmul %32, %27, %cst_8 {dimension_numbers = #tpu.dot_dimension_numbers<[1], [0], [0], [1], [0, 0, 1, 1], [], []>} : vector<4x4xbf16>, vector<4x128xbf16>, vector<4x128xf32> -> vector<4x128xf32>
    %34 = arith.subf %0, %33 : vector<4x128xf32>
    %35 = arith.truncf %34 : vector<4x128xf32> to vector<4x128xbf16>
    %cst_9 = arith.constant dense<0.000000e+00> : vector<4x4xf32>
    %36 = tpu.matmul %35, %14, %cst_9 {dimension_numbers = #tpu.dot_dimension_numbers<[1], [0], [0], [1], [0, 0, 1, 1], [], []>} : vector<4x128xbf16>, vector<128x4xbf16>, vector<4x4xf32> -> vector<4x4xf32>
    %cst_10 = arith.constant 3.125000e-02 : f32
    %37 = vector.broadcast %cst_10 : f32 to vector<4x4xf32>
    %38 = arith.mulf %36, %37 : vector<4x4xf32>
    %39 = arith.mulf %34, %34 : vector<4x128xf32>
    %40 = arith.truncf %39 : vector<4x128xf32> to vector<4x128xbf16>
    %41 = arith.extf %40 : vector<4x128xbf16> to vector<4x128xf32>
    %42 = arith.subf %39, %41 : vector<4x128xf32>
    %43 = arith.truncf %42 : vector<4x128xf32> to vector<4x128xbf16>
    %cst_11 = arith.constant dense<0.000000e+00> : vector<4x4xf32>
    %44 = tpu.matmul %40, %14, %cst_11 {dimension_numbers = #tpu.dot_dimension_numbers<[1], [0], [0], [1], [0, 0, 1, 1], [], []>} : vector<4x128xbf16>, vector<128x4xbf16>, vector<4x4xf32> -> vector<4x4xf32>
    %cst_12 = arith.constant dense<0.000000e+00> : vector<4x4xf32>
    %45 = tpu.matmul %43, %14, %cst_12 {dimension_numbers = #tpu.dot_dimension_numbers<[1], [0], [0], [1], [0, 0, 1, 1], [], []>} : vector<4x128xbf16>, vector<128x4xbf16>, vector<4x4xf32> -> vector<4x4xf32>
    %46 = arith.addf %44, %45 : vector<4x4xf32>
    %cst_13 = arith.constant 3.125000e-02 : f32
    %47 = vector.broadcast %cst_13 : f32 to vector<4x4xf32>
    %48 = arith.mulf %46, %47 : vector<4x4xf32>
    %49 = arith.mulf %38, %38 : vector<4x4xf32>
    %50 = arith.subf %48, %49 : vector<4x4xf32>
    %cst_14 = arith.constant 0.000000e+00 : f32
    %51 = vector.broadcast %cst_14 : f32 to vector<4x4xf32>
    %52 = arith.maximumf %50, %51 : vector<4x4xf32>
    %cst_15 = arith.constant 9.99999974E-6 : f32
    %53 = vector.broadcast %cst_15 : f32 to vector<4x4xf32>
    %54 = arith.addf %52, %53 : vector<4x4xf32>
    %55 = math.rsqrt %54 : vector<4x4xf32>
    %56 = arith.truncf %55 : vector<4x4xf32> to vector<4x4xbf16>
    %57 = arith.extf %56 : vector<4x4xbf16> to vector<4x4xf32>
    %58 = arith.subf %55, %57 : vector<4x4xf32>
    %59 = arith.truncf %58 : vector<4x4xf32> to vector<4x4xbf16>
    %cst_16 = arith.constant dense<0.000000e+00> : vector<4x128xf32>
    %60 = tpu.matmul %56, %27, %cst_16 {dimension_numbers = #tpu.dot_dimension_numbers<[1], [0], [0], [1], [0, 0, 1, 1], [], []>} : vector<4x4xbf16>, vector<4x128xbf16>, vector<4x128xf32> -> vector<4x128xf32>
    %cst_17 = arith.constant dense<0.000000e+00> : vector<4x128xf32>
    %61 = tpu.matmul %59, %27, %cst_17 {dimension_numbers = #tpu.dot_dimension_numbers<[1], [0], [0], [1], [0, 0, 1, 1], [], []>} : vector<4x4xbf16>, vector<4x128xbf16>, vector<4x128xf32> -> vector<4x128xf32>
    %62 = arith.addf %60, %61 : vector<4x128xf32>
    %63 = arith.mulf %0, %62 : vector<4x128xf32>
    %64 = vector.broadcast %1 : vector<1x128xf32> to vector<4x128xf32>
    %65 = arith.mulf %63, %64 : vector<4x128xf32>
    %c0_18 = arith.constant 0 : index
    %c0_19 = arith.constant 0 : index
    %66 = vector.load %arg3[%c0_18, %c0_19] : memref<4x128xf32, #tpu.memory_space<vmem>>, vector<4x128xf32>
    tpu.vector_store %arg3[%c0_18, %c0_19], %65 {strides = array<i32>} : memref<4x128xf32, #tpu.memory_space<vmem>>, vector<4x128xf32>,
    return
  }
  func.func @transform_0(%arg0: i32) -> (i32, i32) {
    %c0_i32 = arith.constant 0 : i32
    %c0_i32_0 = arith.constant 0 : i32
    return %arg0, %c0_i32 : i32, i32
  }
  func.func @transform_1(%arg0: i32) -> (i32, i32) {
    %c0_i32 = arith.constant 0 : i32
    %c0_i32_0 = arith.constant 0 : i32
    %c0_i32_1 = arith.constant 0 : i32
    return %c0_i32, %c0_i32_0 : i32, i32
  }
  func.func @transform_2(%arg0: i32) -> (i32, i32) {
    %c0_i32 = arith.constant 0 : i32
    %c0_i32_0 = arith.constant 0 : i32
    return %arg0, %c0_i32 : i32, i32
  }
}

</mosaic_0001>

<llo_original>
// kernel: tpu_custom_call.1
$region0: #{tpu_custom_call.1}
  #allocation0 [shape = 'u32[]', space=smem, size = 0x4, offset = 0x4, fixed_abs, tag = 'smem constant byte address 0x4 - core index']
  #allocation1 [shape = 'u32[72,128]{1,0:T(1,128)}', space=vmem, size = 0x9000, scoped, tag = 'internal scratch']
  %s0 = inlined_call_operand.hbm [shape: f32[4,128], index: 0, kind: input, shape index: {}]
  %s1 = inlined_call_operand.hbm [shape: f32[1,128], index: 1, kind: input, shape index: {}]
  %s2 = inlined_call_operand.hbm [shape: f32[4,128], index: 2, kind: output, shape index: {}]
  %s3 = sld [smem:[#allocation0]]
  $region26: #{tpu_custom_call.1} parent=0
    _
  %s5 = ssub.s32 1, %s3
  %s6 = scalar_select 0, %s5, %s3
  $region1: #{tpu_custom_call.1} parent=0
    #allocation2 [shape = 'u8[2048]{0}', space=vmem, size = 0x800, scoped, tag = 'input window, operand 0, single buffered']
    #allocation3 [shape = 's32[1]{0}', space=sflag, size = 0x4, scoped, tag = 'scoped memory for tpu_custom_call.1']
    #allocation4 [shape = 's32[1]{0}', space=sflag, size = 0x4, scoped, tag = 'scoped memory for tpu_custom_call.1']
    #allocation5 [shape = 'u8[512]{0}', space=vmem, size = 0x400, scoped, tag = 'input window, operand 1, single buffered']
    #allocation6 [shape = 's32[1]{0}', space=sflag, size = 0x4, scoped, tag = 'scoped memory for tpu_custom_call.1']
    #allocation7 [shape = 'u8[2048]{0}', space=vmem, size = 0x800, scoped, tag = 'output window, operand 0, single buffered']
    %7 = vsyncpa [#allocation3], 0
    %8 = vsyncpa [#allocation6], 0
    %9 = vsyncpa [#allocation4], 0
    // Predicated region
    $region2: #{tpu_custom_call.1} parent=1 // pred_check
      _
    $region3: #{tpu_custom_call.1} parent=1 // pred_check_branch
      %11 = sbr.rel (0) target = $region5
    $region4: #{tpu_custom_call.1} parent=1 // pred_region
      %13 = vsyncadd [#allocation3], 0
      %s15 = sshll.u32 %s0, 4
      %s16 = int_to_ptr.hbm [resolvable:$true] %s15
      %s17 = sshll.u32 [#allocation2], 4
      %s18 = int_to_ptr.vmem [resolvable:$true] %s17
      %20 = dma.hbm_to_vmem [thread:$0]  %s16, 64, %s18, [#allocation3]
    $region5: #{tpu_custom_call.1} parent=1 // pred_fallthru
      _
    // Predicated region
    $region6: #{tpu_custom_call.1} parent=1 // pred_check
      _
    $region7: #{tpu_custom_call.1} parent=1 // pred_check_branch
      %22 = sbr.rel (0) target = $region9
    $region8: #{tpu_custom_call.1} parent=1 // pred_region
      %24 = vsyncadd [#allocation6], 0
      %s26 = sshll.u32 %s1, 4
      %s27 = int_to_ptr.hbm [resolvable:$true] %s26
      %s28 = sshll.u32 [#allocation5], 4
      %s29 = int_to_ptr.vmem [resolvable:$true] %s28
      %31 = dma.hbm_to_vmem [thread:$0]  %s27, 16, %s29, [#allocation6]
    $region9: #{tpu_custom_call.1} parent=1 // pred_fallthru
      _
    // Predicated region
    $region10: #{tpu_custom_call.1} parent=1 // pred_check
      _
    $region11: #{tpu_custom_call.1} parent=1 // pred_check_branch
      %33 = sbr.rel (0) target = $region13
    $region12: #{tpu_custom_call.1} parent=1 // pred_region
      %35 = dma.done [#allocation3], 64
    $region13: #{tpu_custom_call.1} parent=1 // pred_fallthru
      _
    // Predicated region
    $region14: #{tpu_custom_call.1} parent=1 // pred_check
      _
    $region15: #{tpu_custom_call.1} parent=1 // pred_check_branch
      %37 = sbr.rel (0) target = $region17
    $region16: #{tpu_custom_call.1} parent=1 // pred_region
      %39 = dma.done [#allocation6], 16
    $region17: #{tpu_custom_call.1} parent=1 // pred_fallthru
      _
    %v41 = vld [vmem:[#allocation2] sm:$0xf]
    %v42 = vld [vmem:[#allocation5] sm:$0x1]
    %v43 = vlaneseq
    %v44 = vshrl.u32 %v43, 7
    %v45 = vadd.s32 %v44, 8
    %v46 = vadd.s32 %v44, 16
    %v47 = vadd.s32 %v44, 24
    %v48 = vadd.s32 %v44, 32
    %v49 = vadd.s32 %v44, 40
    %v50 = vadd.s32 %v44, 48
    %v51 = vadd.s32 %v44, 56
    %v52 = vadd.s32 %v44, 64
    %v53 = vadd.s32 %v44, 72
    %v54 = vadd.s32 %v44, 80
    %v55 = vadd.s32 %v44, 88
    %v56 = vadd.s32 %v44, 96
    %v57 = vadd.s32 %v44, 104
    %v58 = vadd.s32 %v44, 112
    %v59 = vadd.s32 %v44, 120
    %v60 = vlaneseq
    %v61 = vand.u32 %v60, 127
    %v62 = vmul.u32 %v61, 32
    %v63 = vsub.s32 %v44, %v62
    %v64 = vsub.s32 %v45, %v62
    %v65 = vsub.s32 %v46, %v62
    %v66 = vsub.s32 %v47, %v62
    %v67 = vsub.s32 %v48, %v62
    %v68 = vsub.s32 %v49, %v62
    %v69 = vsub.s32 %v50, %v62
    %v70 = vsub.s32 %v51, %v62
    %v71 = vsub.s32 %v52, %v62
    %v72 = vsub.s32 %v53, %v62
    %v73 = vsub.s32 %v54, %v62
    %v74 = vsub.s32 %v55, %v62
    %v75 = vsub.s32 %v56, %v62
    %v76 = vsub.s32 %v57, %v62
    %v77 = vsub.s32 %v58, %v62
    %v78 = vsub.s32 %v59, %v62
    %vm79 = vcmp.ge.s32.totalorder %v63, 0
    %vm80 = vcmp.ge.s32.totalorder %v64, 0
    %vm81 = vcmp.ge.s32.totalorder %v65, 0
    %vm82 = vcmp.ge.s32.totalorder %v66, 0
    %vm83 = vcmp.ge.s32.totalorder %v67, 0
    %vm84 = vcmp.ge.s32.totalorder %v68, 0
    %vm85 = vcmp.ge.s32.totalorder %v69, 0
    %vm86 = vcmp.ge.s32.totalorder %v70, 0
    %vm87 = vcmp.ge.s32.totalorder %v71, 0
    %vm88 = vcmp.ge.s32.totalorder %v72, 0
    %vm89 = vcmp.ge.s32.totalorder %v73, 0
    %vm90 = vcmp.ge.s32.totalorder %v74, 0
    %vm91 = vcmp.ge.s32.totalorder %v75, 0
    %vm92 = vcmp.ge.s32.totalorder %v76, 0
    %vm93 = vcmp.ge.s32.totalorder %v77, 0
    %vm94 = vcmp.ge.s32.totalorder %v78, 0
    %vm95 = vcmp.lt.s32.totalorder %v63, 32
    %vm96 = vcmp.lt.s32.totalorder %v64, 32
    %vm97 = vcmp.lt.s32.totalorder %v65, 32
    %vm98 = vcmp.lt.s32.totalorder %v66, 32
    %vm99 = vcmp.lt.s32.totalorder %v67, 32
    %vm100 = vcmp.lt.s32.totalorder %v68, 32
    %vm101 = vcmp.lt.s32.totalorder %v69, 32
    %vm102 = vcmp.lt.s32.totalorder %v70, 32
    %vm103 = vcmp.lt.s32.totalorder %v71, 32
    %vm104 = vcmp.lt.s32.totalorder %v72, 32
    %vm105 = vcmp.lt.s32.totalorder %v73, 32
    %vm106 = vcmp.lt.s32.totalorder %v74, 32
    %vm107 = vcmp.lt.s32.totalorder %v75, 32
    %vm108 = vcmp.lt.s32.totalorder %v76, 32
    %vm109 = vcmp.lt.s32.totalorder %v77, 32
    %vm110 = vcmp.lt.s32.totalorder %v78, 32
    %vm111 = vmand %vm79, %vm95
    %vm112 = vmand %vm80, %vm96
    %vm113 = vmand %vm81, %vm97
    %vm114 = vmand %vm82, %vm98
    %vm115 = vmand %vm83, %vm99
    %vm116 = vmand %vm84, %vm100
    %vm117 = vmand %vm85, %vm101
    %vm118 = vmand %vm86, %vm102
    %vm119 = vmand %vm87, %vm103
    %vm120 = vmand %vm88, %vm104
    %vm121 = vmand %vm89, %vm105
    %vm122 = vmand %vm90, %vm106
    %vm123 = vmand %vm91, %vm107
    %vm124 = vmand %vm92, %vm108
    %vm125 = vmand %vm93, %vm109
    %vm126 = vmand %vm94, %vm110
    %v127 = vsel %vm111, 1, 0
    %v128 = vsel %vm112, 1, 0
    %v129 = vsel %vm113, 1, 0
    %v130 = vsel %vm114, 1, 0
    %v131 = vsel %vm115, 1, 0
    %v132 = vsel %vm116, 1, 0
    %v133 = vsel %vm117, 1, 0
    %v134 = vsel %vm118, 1, 0
    %v135 = vsel %vm119, 1, 0
    %v136 = vsel %vm120, 1, 0
    %v137 = vsel %vm121, 1, 0
    %v138 = vsel %vm122, 1, 0
    %v139 = vsel %vm123, 1, 0
    %v140 = vsel %vm124, 1, 0
    %v141 = vsel %vm125, 1, 0
    %v142 = vsel %vm126, 1, 0
    %v143 = vcvt.s32.f32 %v127
    %v144 = vcvt.s32.f32 %v128
    %v145 = vcvt.s32.f32 %v129
    %v146 = vcvt.s32.f32 %v130
    %v147 = vcvt.s32.f32 %v131
    %v148 = vcvt.s32.f32 %v132
    %v149 = vcvt.s32.f32 %v133
    %v150 = vcvt.s32.f32 %v134
    %v151 = vcvt.s32.f32 %v135
    %v152 = vcvt.s32.f32 %v136
    %v153 = vcvt.s32.f32 %v137
    %v154 = vcvt.s32.f32 %v138
    %v155 = vcvt.s32.f32 %v139
    %v156 = vcvt.s32.f32 %v140
    %v157 = vcvt.s32.f32 %v141
    %v158 = vcvt.s32.f32 %v142
    %v159 = vpack.c.bf16 %v144, %v143
    %v160 = vpack.c.bf16 %v146, %v145
    %v161 = vpack.c.bf16 %v148, %v147
    %v162 = vpack.c.bf16 %v150, %v149
    %v163 = vpack.c.bf16 %v152, %v151
    %v164 = vpack.c.bf16 %v154, %v153
    %v165 = vpack.c.bf16 %v156, %v155
    %v166 = vpack.c.bf16 %v158, %v157
    %v167 = vmul.u32 %v44, 32
    %v168 = vsub.s32 %v61, %v167
    %vm169 = vcmp.ge.s32.totalorder %v168, 0
    %vm170 = vcmp.lt.s32.totalorder %v168, 32
    %vm171 = vmand %vm169, %vm170
    %v172 = vsel %vm171, 1, 0
    %v173 = vcvt.s32.f32 %v172
    %v174 = vpack.c.bf16 %v173, %v173
    %v175 = vpack.c.bf16 %v41, %v41
    %176 = vmatpush.bf16.msra.mxu0 %v166
    %177 = vmatpush.bf16.msra.mxu0 %v165
    %178 = vmatpush.bf16.msra.mxu0 %v164
    %179 = vmatpush.bf16.msra.mxu0 %v163
    %180 = vmatpush.bf16.msra.mxu0 %v162
    %181 = vmatpush.bf16.msra.mxu0 %v161
    %182 = vmatpush.bf16.msra.mxu0 %v160
    %183 = vmatpush.bf16.msra.mxu0 %v159
    %184 = vmatmul.bf16.gmra.mxu0 %v175
    %v185 = vpop.f32.mrf.mxu0
    %v186 = vadd.f32 0.0, %v185
    %v187 = vpop.f32.mrf.mxu0
    %188 = vdwg.mxu0
    %v189 = vmul.f32 %v186, 0.03125
    %v190 = vpack.c.bf16 %v189, %v189
    %vm191 = vcmask 31744
    %v193 = vsel %vm191, %v190, 0
    %vm195 = vcmask 1041408
    %v197 = vsel %vm195, %v174, 0
    %199 = vmatpush.bf16.msra.mxu0 0
    %200 = vmatpush.bf16.msra.mxu0 0
    %201 = vmatpush.bf16.msra.mxu0 0
    %202 = vmatpush.bf16.msra.mxu0 0
    %203 = vmatpush.bf16.msra.mxu0 0
    %204 = vmatpush.bf16.msra.mxu0 0
    %205 = vmatpush.bf16.msra.mxu0 0
    %206 = vmatpush.bf16.msra.mxu0 %v197
    %207 = vmatmul.bf16.gmra.mxu0 %v193
    %v208 = vpop.f32.mrf.mxu0
    %v209 = vadd.f32 0.0, %v208
    %v210 = vpop.f32.mrf.mxu0
    %211 = vdwg.mxu0
    %v212 = vsub.f32 %v41, %v209
    %v213 = vpack.c.bf16 %v212, %v212
    %214 = vmatpush.bf16.msra.mxu0 %v166
    %215 = vmatpush.bf16.msra.mxu0 %v165
    %216 = vmatpush.bf16.msra.mxu0 %v164
    %217 = vmatpush.bf16.msra.mxu0 %v163
    %218 = vmatpush.bf16.msra.mxu0 %v162
    %219 = vmatpush.bf16.msra.mxu0 %v161
    %220 = vmatpush.bf16.msra.mxu0 %v160
    %221 = vmatpush.bf16.msra.mxu0 %v159
    %222 = vmatmul.bf16.gmra.mxu0 %v213
    %v223 = vpop.f32.mrf.mxu0
    %v224 = vadd.f32 0.0, %v223
    %v225 = vpop.f32.mrf.mxu0
    %226 = vdwg.mxu0
    %v227 = vmul.f32 %v224, 0.03125
    %v228 = vmul.f32 %v212, %v212
    %v229 = vpack.c.bf16 %v228, %v228
    %v230 = vunpack.c.l.bf16 %v229
    %v231 = vsub.f32 %v228, %v230
    %v232 = vpack.c.bf16 %v231, %v231
    %233 = vmatpush.bf16.msra.mxu0 %v166
    %234 = vmatpush.bf16.msra.mxu0 %v165
    %235 = vmatpush.bf16.msra.mxu0 %v164
    %236 = vmatpush.bf16.msra.mxu0 %v163
    %237 = vmatpush.bf16.msra.mxu0 %v162
    %238 = vmatpush.bf16.msra.mxu0 %v161
    %239 = vmatpush.bf16.msra.mxu0 %v160
    %240 = vmatpush.bf16.msra.mxu0 %v159
    %241 = vmatmul.bf16.gmra.mxu0 %v232
    %v242 = vpop.f32.mrf.mxu0
    %v243 = vadd.f32 0.0, %v242
    %v244 = vpop.f32.mrf.mxu0
    %245 = vdwg.mxu0
    %246 = vmatpush.bf16.msra.mxu0 %v166
    %247 = vmatpush.bf16.msra.mxu0 %v165
    %248 = vmatpush.bf16.msra.mxu0 %v164
    %249 = vmatpush.bf16.msra.mxu0 %v163
    %250 = vmatpush.bf16.msra.mxu0 %v162
    %251 = vmatpush.bf16.msra.mxu0 %v161
    %252 = vmatpush.bf16.msra.mxu0 %v160
    %253 = vmatpush.bf16.msra.mxu0 %v159
    %254 = vmatmul.bf16.gmra.mxu0 %v229
    %v255 = vpop.f32.mrf.mxu0
    %v256 = vadd.f32 %v243, %v255
    %v257 = vpop.f32.mrf.mxu0
    %258 = vdwg.mxu0
    %v259 = vmul.f32 %v256, 0.03125
    %v260 = vmul.f32 %v227, %v227
    %v261 = vsub.f32 %v259, %v260
    %v262 = vmax.f32 %v261, 0.0
    %v263 = vadd.f32 %v262, 1e-05
    %v264 = vrsqrt.pop %v263
    %v265 = vmul.f32 %v264, %v263
    %v266 = vmul.f32 %v265, %v264
    %v267 = vmul.f32 0.5, %v266
    %v268 = vsub.f32 1.5, %v267
    %v269 = vmul.f32 %v264, %v268
    %vm270 = vweird.f32 %v263
    %vm271 = vweird.f32 %v264
    %vm272 = vmor %vm270, %vm271
    %v273 = vsel %vm272, %v264, %v269
    %v274 = vpack.c.bf16 %v273, %v273
    %v275 = vunpack.c.l.bf16 %v274
    %v276 = vsub.f32 %v273, %v275
    %v277 = vpack.c.bf16 %v276, %v276
    %v279 = vsel %vm191, %v277, 0
    %281 = vmatpush.bf16.msra.mxu0 0
    %282 = vmatpush.bf16.msra.mxu0 0
    %283 = vmatpush.bf16.msra.mxu0 0
    %284 = vmatpush.bf16.msra.mxu0 0
    %285 = vmatpush.bf16.msra.mxu0 0
    %286 = vmatpush.bf16.msra.mxu0 0
    %287 = vmatpush.bf16.msra.mxu0 0
    %288 = vmatpush.bf16.msra.mxu0 %v197
    %289 = vmatmul.bf16.gmra.mxu0 %v279
    %v290 = vpop.f32.mrf.mxu0
    %v291 = vadd.f32 0.0, %v290
    %v292 = vpop.f32.mrf.mxu0
    %293 = vdwg.mxu0
    %v295 = vsel %vm191, %v274, 0
    %297 = vmatpush.bf16.msra.mxu0 0
    %298 = vmatpush.bf16.msra.mxu0 0
    %299 = vmatpush.bf16.msra.mxu0 0
    %300 = vmatpush.bf16.msra.mxu0 0
    %301 = vmatpush.bf16.msra.mxu0 0
    %302 = vmatpush.bf16.msra.mxu0 0
    %303 = vmatpush.bf16.msra.mxu0 0
    %304 = vmatpush.bf16.msra.mxu0 %v197
    %305 = vmatmul.bf16.gmra.mxu0 %v295
    %v306 = vpop.f32.mrf.mxu0
    %v307 = vadd.f32 %v291, %v306
    %v308 = vpop.f32.mrf.mxu0
    %309 = vdwg.mxu0
    %v310 = vmul.f32 %v41, %v307
    %v312 = vperm.slane %v42, 0
    %v314 = vmul.f32 %v310, %v312
    %315 = vst [vmem:[#allocation7] sm:$0xf] %v314
    // Predicated region
    $region18: #{tpu_custom_call.1} parent=1 // pred_check
      _
    $region19: #{tpu_custom_call.1} parent=1 // pred_check_branch
      %317 = sbr.rel (0) target = $region21
    $region20: #{tpu_custom_call.1} parent=1 // pred_region
      %319 = vsyncadd [#allocation4], 0
      %s321 = sshll.u32 [#allocation7], 4
      %s322 = int_to_ptr.vmem [resolvable:$true] %s321
      %s323 = sshll.u32 %s2, 4
      %s324 = int_to_ptr.hbm [resolvable:$true] %s323
      %326 = dma.vmem_to_hbm [thread:$0]  %s322, 64, %s324, [#allocation4]
    $region21: #{tpu_custom_call.1} parent=1 // pred_fallthru
      _
    // Predicated region
    $region22: #{tpu_custom_call.1} parent=1 // pred_check
      _
    $region23: #{tpu_custom_call.1} parent=1 // pred_check_branch
      %328 = sbr.rel (0) target = $region25
    $region24: #{tpu_custom_call.1} parent=1 // pred_region
      %330 = dma.done [#allocation4], 64
    $region25: #{tpu_custom_call.1} parent=1 // pred_fallthru
      _
    %331 = vsyncpa [#allocation3], 1
    %332 = vsyncpa [#allocation6], 1
    %333 = vsyncpa [#allocation4], 1

</llo_original>
